<compile_context>
chip_gen: v7x
topology: tpu7x:2x2x1
jax: 0.10.0
libtpu: 0.0.40
codegen_flags: <defaults>
</compile_context>

<pallas_src>
import jax
import jax.numpy as jnp
from jax.experimental import pallas as pl
from jax.experimental.pallas import tpu as pltpu


def _round_up(v, m):
    return (v + m - 1) // m * m


def _cdiv(a, b):
    return (a + b - 1) // b


def _vmem_capacity_bytes():
    """Physical per-core VMEM; conservative 64 MiB (v7x) fallback."""
    try:
        info = pltpu.get_tpu_info()
        cap = getattr(info, "vmem_capacity_bytes", None)
        if cap:
            return int(cap)
    except Exception:
        pass
    return 64 * 1024 * 1024


def _largest_divisor_tile(total, step, cap):
    """Largest multiple of `step` that divides `total` and is <= cap."""
    cap = max(step, min(cap, total))
    cap = (cap // step) * step
    t = cap
    while t > step:
        if total % t == 0:
            return t
        t -= step
    return step


def _pick_kc_tiles(tile_n, dp128, cp, in_itm, out_itm, cap, mt_k, mt_c, need_scratch):
    """Choose (tile_k, tile_c).  Prefer W fully K-resident; else stream K."""

    def footprint(tk, tc, scratch):
        fb = (2 * tile_n * tk * in_itm        # x (double-buffered)
              + 2 * tk * tc * in_itm          # w (budgeted double-buffered)
              + 2 * 8 * tc * 4                # f32 bias row (sublane padded)
              + 2 * tile_n * tc * out_itm)    # output tile (double-buffered)
        if scratch:
            fb += tile_n * tc * 4             # f32 accumulator
        return fb

    col_cands = [c for c in range(min(cp, mt_c), 0, -128) if cp % c == 0]
    if not col_cands:
        col_cands = [128]

    # Mode A: W K-resident (single K step) -> W streamed from HBM exactly once
    # when nj == 1, no accumulator needed.
    if mt_k is None or mt_k >= dp128:
        for tc in col_cands:
            if footprint(dp128, tc, False) <= cap:
                return dp128, tc

    # Mode B: stream K with a near-equal 128-aligned split (minimal K padding).
    k_cap = dp128 if mt_k is None else min(mt_k, dp128)
    for tc in col_cands:
        nk = max(1, _cdiv(dp128, k_cap))
        while True:
            tk = _round_up(_cdiv(dp128, nk), 128)
            if footprint(tk, tc, need_scratch) <= cap:
                return tk, tc
            if tk <= 128:
                break
            nk += 1

    # Pathologically small budget: minimum legal tiles.
    return 128, 128


# ---------------------------------------------------------------------------
# Kernels
# ---------------------------------------------------------------------------

def _linear_kernel_resident(x_ref, w_ref, b_ref, o_ref):
    # Whole K is resident: one MXU matmul, f32 bias add, single lane-dense store.
    o_ref[...] = (
        jnp.dot(x_ref[...], w_ref[...], preferred_element_type=jnp.float32)
        + b_ref[...]
    ).astype(o_ref.dtype)


def _linear_kernel_stream_direct(x_ref, w_ref, b_ref, o_ref):
    # Streaming K, f32 output: accumulate straight into the resident output
    # block (it keeps the same block index across the k axis) -> no scratch.
    k = pl.program_id(2)
    part = jnp.dot(x_ref[...], w_ref[...], preferred_element_type=jnp.float32)

    @pl.when(k == 0)
    def _():
        o_ref[...] = part

    @pl.when(k > 0)
    def _():
        o_ref[...] += part

    @pl.when(k == pl.num_programs(2) - 1)
    def _():
        o_ref[...] += b_ref[...]


def _linear_kernel_stream_acc(x_ref, w_ref, b_ref, o_ref, acc_ref):
    # Streaming K, narrow output dtype: f32 VMEM accumulator, cast at the end.
    k = pl.program_id(2)

    @pl.when(k == 0)
    def _():
        acc_ref[...] = jnp.zeros_like(acc_ref)

    acc_ref[...] += jnp.dot(
        x_ref[...], w_ref[...], preferred_element_type=jnp.float32
    )

    @pl.when(k == pl.num_programs(2) - 1)
    def _():
        o_ref[...] = (acc_ref[...] + b_ref[...]).astype(o_ref.dtype)


# ---------------------------------------------------------------------------
# Wrapper
# ---------------------------------------------------------------------------

def linear_blackbox(x, w, b, *, compute_dtype=None,
                    max_tile_n=512, max_tile_k=None, max_tile_c=None):
    """Pallas-accelerated blackbox function: f(x) = x @ w + b.

    x: [N, D], w: [D, C], b: [1, C] -> [N, C].
    `compute_dtype=jnp.bfloat16` casts the matmul operands (bf16-native MXU on
    v5e/v6e/v7x) while keeping f32 accumulation and an f32 bias add.
    `max_tile_k` / `max_tile_c` are optional caps (rounded to 128) mostly for
    testing the K-streaming / column-tiled paths.
    """
    N, D = x.shape
    Dw, C = w.shape
    assert Dw == D and b.shape == (1, C)
    out_dtype = x.dtype

    if compute_dtype is not None:
        x = x.astype(compute_dtype)
        w = w.astype(compute_dtype)

    in_itm = jnp.dtype(x.dtype).itemsize
    out_itm = jnp.dtype(out_dtype).itemsize

    # Sublane multiple: 16 for 2-byte dtypes (packed), 8 for f32.
    sub = 16 if in_itm == 2 else 8
    sub = max(sub, 16 if out_itm == 2 else 8)

    cp = _round_up(C, 128)                 # lane-dense output (unmasked vst)
    dp128 = _round_up(D, 128)

    # Row tiling: pad only to the sublane multiple, divisor-based tile size.
    n_pad = _round_up(N, sub)
    mt_n = max(sub, (int(max_tile_n) // sub) * sub)
    tile_n = _largest_divisor_tile(n_pad, sub, mt_n)
    # Guarantee >= 2 row tiles when possible so both v7x TensorCores get work.
    if n_pad // tile_n < 2 and tile_n > sub and n_pad >= 2 * sub:
        half_cap = max(sub, ((tile_n // 2) // sub) * sub)
        tile_n = _largest_divisor_tile(n_pad, sub, half_cap)

    # Generation-aware VMEM budget (~25% headroom below physical capacity).
    phys_vmem = _vmem_capacity_bytes()
    cap = (phys_vmem * 3) // 4

    need_scratch = jnp.dtype(out_dtype) != jnp.dtype(jnp.float32)
    mt_k = None if max_tile_k is None else max(128, (int(max_tile_k) // 128) * 128)
    mt_c = cp if max_tile_c is None else max(128, (int(max_tile_c) // 128) * 128)

    tile_k, tile_c = _pick_kc_tiles(
        tile_n, dp128, cp, in_itm, out_itm, cap, mt_k, mt_c, need_scratch)

    nk = _cdiv(dp128, tile_k)
    dp = nk * tile_k
    nj = cp // tile_c
    ni = n_pad // tile_n

    xp = jnp.pad(x, ((0, n_pad - N), (0, dp - D)))
    wp = jnp.pad(w, ((0, dp - D), (0, cp - C)))
    bp = jnp.pad(b.astype(jnp.float32), ((0, 0), (0, cp - C)))

    # Actual tile footprint -> explicit VMEM limit (with headroom, <= physical).
    footprint = (2 * tile_n * tile_k * in_itm
                 + 2 * tile_k * tile_c * in_itm
                 + 2 * 8 * tile_c * 4
                 + 2 * tile_n * tile_c * out_itm)
    use_scratch = (nk > 1) and need_scratch
    if use_scratch:
        footprint += tile_n * tile_c * 4
    vmem_limit = int(min(phys_vmem,
                         max(footprint + footprint // 4 + (2 << 20), 8 << 20)))

    # Advisory cost hint.  W is DMA'd once when its block index is constant
    # (nj == nk == 1); otherwise it is re-streamed per row tile.
    w_fetches = 1 if (nk == 1 and nj == 1) else ni
    cost = pl.CostEstimate(
        flops=2 * n_pad * dp * cp,
        transcendentals=0,
        bytes_accessed=(n_pad * dp * in_itm
                        + w_fetches * dp * cp * in_itm
                        + cp * 4
                        + n_pad * cp * out_itm),
    )

    if nk == 1:
        grid = (ni, nj)
        in_specs = [
            pl.BlockSpec((tile_n, tile_k), lambda i, j: (i, 0)),   # x row tile
            pl.BlockSpec((tile_k, tile_c), lambda i, j: (0, j)),   # resident W
            pl.BlockSpec((1, tile_c), lambda i, j: (0, j)),        # f32 bias
        ]
        out_spec = pl.BlockSpec((tile_n, tile_c), lambda i, j: (i, j))
        kernel = _linear_kernel_resident
        scratch = []
        dims = ("parallel", "parallel")
    else:
        grid = (ni, nj, nk)
        in_specs = [
            pl.BlockSpec((tile_n, tile_k), lambda i, j, k: (i, k)),
            pl.BlockSpec((tile_k, tile_c), lambda i, j, k: (k, j)),
            pl.BlockSpec((1, tile_c), lambda i, j, k: (0, j)),
        ]
        out_spec = pl.BlockSpec((tile_n, tile_c), lambda i, j, k: (i, j))
        if use_scratch:
            kernel = _linear_kernel_stream_acc
            scratch = [pltpu.VMEM((tile_n, tile_c), jnp.float32)]
        else:
            kernel = _linear_kernel_stream_direct
            scratch = []
        dims = ("parallel", "parallel", "arbitrary")

    out_padded = pl.pallas_call(
        kernel,
        out_shape=jax.ShapeDtypeStruct((n_pad, cp), out_dtype),
        grid_spec=pltpu.PrefetchScalarGridSpec(
            num_scalar_prefetch=0,
            grid=grid,
            in_specs=in_specs,
            out_specs=out_spec,
            scratch_shapes=scratch,
        ),
        compiler_params=pltpu.CompilerParams(
            dimension_semantics=dims,
            vmem_limit_bytes=vmem_limit,
        ),
        cost_estimate=cost,
    )(xp, wp, bp)

    return out_padded[:N, :C]


class GradientWrapper:
    """JAX/Pallas port of fooling.estimators.GradientWrapper (forward semantics)."""

    def __init__(self, func):
        self.func = func
        self.training = True

    def batch_query(self, x):
        """x: [n_batch, n_dim, nb_samples] -> [n_batch, n_out, nb_samples].

        Kept func-agnostic like the reference (func is a blackbox on [*, n_dim]).
        # TODO(synk): for the built-in linear blackbox a fused kernel contracting
        # n_dim directly on the [b, d, s] layout would remove both HBM transposes.
        """
        n_batch, n_dim, nb_samples = x.shape
        xr = jnp.transpose(x, (0, 2, 1)).reshape(-1, n_dim)
        outputs = self.func(xr)
        outputs = outputs.reshape(n_batch, nb_samples, -1)
        return jnp.transpose(outputs, (0, 2, 1))

    def estimate_grad(self, x):
        # TODO(synk): abstract in the reference (raises NotImplementedError);
        # concrete estimators (e.g. NES) subclass and implement it.
        raise NotImplementedError

    def forward(self, x):
        # Both reference branches return func(x); training mode only attaches a
        # custom backward (estimated gradient), never changing forward values.
        return self.func(x)

    __call__ = forward


if __name__ == "__main__":
    key = jax.random.PRNGKey(0)
    k_x, k_w, k_b, k_q, k_r, k_x2, k_w2, k_b2 = jax.random.split(key, 8)

    N, D, C = 8, 32, 16  # nbatch, ndim, n_out

    # Deterministic synthetic parameters for the blackbox function.
    w = jax.random.normal(k_w, (D, C), dtype=jnp.float32) * 0.1
    b = jax.random.normal(k_b, (1, C), dtype=jnp.float32) * 0.1

    func = lambda xs: linear_blackbox(xs, w, b)
    wrapper = GradientWrapper(func)
    wrapper.training = True

    def ref_linear(xs, ws, bs):
        return jnp.dot(xs, ws, precision=jax.lax.Precision.HIGHEST) + bs

    # Main forward path: x has shape [nbatch, ndim].  (Resident-W kernel.)
    x = jax.random.normal(k_x, (N, D), dtype=jnp.float32)
    out = jax.block_until_ready(wrapper(x))
    ref = ref_linear(x, w, b)
    assert out.shape == (N, C)
    assert jnp.allclose(out, ref, atol=1e-2, rtol=1e-2)

    # bf16-operand path (bf16-native MXU on v5e/v6e/v7x), f32 accumulation.
    out_bf16 = jax.block_until_ready(
        linear_blackbox(x, w, b, compute_dtype=jnp.bfloat16))
    assert out_bf16.shape == (N, C)
    assert jnp.allclose(out_bf16, ref, atol=5e-2, rtol=5e-2)

    # Ragged batch (N not a multiple of the sublane) exercises row padding.
    xr = jax.random.normal(k_r, (5, D), dtype=jnp.float32)
    out_r = jax.block_until_ready(wrapper(xr))
    assert out_r.shape == (5, C)
    assert jnp.allclose(out_r, ref_linear(xr, w, b), atol=1e-2, rtol=1e-2)

    # batch_query path: x has shape [n_batch, n_dim, nb_samples].
    xq = jax.random.normal(k_q, (2, D, 4), dtype=jnp.float32)
    outq = jax.block_until_ready(wrapper.batch_query(xq))
    refq = jnp.transpose(
        ref_linear(jnp.transpose(xq, (0, 2, 1)).reshape(-1, D), w, b)
        .reshape(2, 4, C), (0, 2, 1))
    assert outq.shape == (2, C, 4)
    assert jnp.allclose(outq, refq, atol=1e-2, rtol=1e-2)

    # Larger problem with tile caps forcing the K-streaming + column-tiled grid.
    N2, D2, C2 = 24, 384, 256
    x2 = jax.random.normal(k_x2, (N2, D2), dtype=jnp.float32)
    w2 = jax.random.normal(k_w2, (D2, C2), dtype=jnp.float32) * 0.05
    b2 = jax.random.normal(k_b2, (1, C2), dtype=jnp.float32) * 0.05
    ref2 = ref_linear(x2, w2, b2)

    # f32 output -> direct accumulation into the output block (no scratch).
    out2 = jax.block_until_ready(
        linear_blackbox(x2, w2, b2, max_tile_k=128, max_tile_c=128))
    assert out2.shape == (N2, C2)
    assert jnp.allclose(out2, ref2, atol=2e-2, rtol=2e-2)

    # bf16 output + operands -> f32 VMEM accumulator streaming path.
    out2b = jax.block_until_ready(
        linear_blackbox(x2.astype(jnp.bfloat16), w2, b2,
                        compute_dtype=jnp.bfloat16, max_tile_k=128))
    assert out2b.shape == (N2, C2)
    assert jnp.allclose(out2b.astype(jnp.float32), ref2, atol=7e-2, rtol=7e-2)

    print("KERNEL_OK")
</pallas_src>

<mosaic_0001>
module attributes {stable_mosaic.version = 11 : i64} {
  func.func @_linear_kernel_resident(%arg0: i32, %arg1: i32, %arg2: memref<8x128xf32, #tpu.memory_space<vmem>>, %arg3: memref<128x128xf32, #tpu.memory_space<vmem>>, %arg4: memref<1x128xf32, #tpu.memory_space<vmem>>, %arg5: memref<8x128xf32, #tpu.memory_space<vmem>>) attributes {dimension_semantics = [#tpu.dimension_semantics<parallel>, #tpu.dimension_semantics<parallel>], iteration_bounds = array<i64: 1, 1>, scalar_prefetch = 0 : i64, scratch_operands = 0 : i64, tpu.core_type = #tpu.core_type<tc>, window_params = [{transform_indices = @transform_0, window_bounds = array<i64: 8, 128>}, {transform_indices = @transform_1, window_bounds = array<i64: 128, 128>}, {transform_indices = @transform_2, window_bounds = array<i64: 1, 128>}, {transform_indices = @transform_3, window_bounds = array<i64: 8, 128>}]} {
    %c0 = arith.constant 0 : index
    %c0_0 = arith.constant 0 : index
    %0 = vector.load %arg2[%c0, %c0_0] : memref<8x128xf32, #tpu.memory_space<vmem>>, vector<8x128xf32>
    %c0_1 = arith.constant 0 : index
    %c0_2 = arith.constant 0 : index
    %1 = vector.load %arg3[%c0_1, %c0_2] : memref<128x128xf32, #tpu.memory_space<vmem>>, vector<128x128xf32>
    %cst = arith.constant dense<0.000000e+00> : vector<8x128xf32>
    %2 = tpu.matmul %0, %1, %cst {dimension_numbers = #tpu.dot_dimension_numbers<[1], [0], [0], [1], [0, 0, 1, 1], [], []>} : vector<8x128xf32>, vector<128x128xf32>, vector<8x128xf32> -> vector<8x128xf32>
    %c0_3 = arith.constant 0 : index
    %c0_4 = arith.constant 0 : index
    %3 = vector.load %arg4[%c0_3, %c0_4] : memref<1x128xf32, #tpu.memory_space<vmem>>, vector<1x128xf32>
    %4 = vector.broadcast %3 : vector<1x128xf32> to vector<8x128xf32>
    %5 = arith.addf %2, %4 : vector<8x128xf32>
    %c0_5 = arith.constant 0 : index
    %c0_6 = arith.constant 0 : index
    %6 = vector.load %arg5[%c0_5, %c0_6] : memref<8x128xf32, #tpu.memory_space<vmem>>, vector<8x128xf32>
    tpu.vector_store %arg5[%c0_5, %c0_6], %5 {strides = array<i32>} : memref<8x128xf32, #tpu.memory_space<vmem>>, vector<8x128xf32>,
    return
  }
  func.func @transform_0(%arg0: i32, %arg1: i32) -> (i32, i32) {
    %c0_i32 = arith.constant 0 : i32
    %c0_i32_0 = arith.constant 0 : i32
    return %arg0, %c0_i32 : i32, i32
  }
  func.func @transform_1(%arg0: i32, %arg1: i32) -> (i32, i32) {
    %c0_i32 = arith.constant 0 : i32
    %c0_i32_0 = arith.constant 0 : i32
    return %c0_i32, %arg1 : i32, i32
  }
  func.func @transform_2(%arg0: i32, %arg1: i32) -> (i32, i32) {
    %c0_i32 = arith.constant 0 : i32
    %c0_i32_0 = arith.constant 0 : i32
    return %c0_i32, %arg1 : i32, i32
  }
  func.func @transform_3(%arg0: i32, %arg1: i32) -> (i32, i32) {
    %c0_i32 = arith.constant 0 : i32
    return %arg0, %arg1 : i32, i32
  }
}

</mosaic_0001>

<llo_original>
// kernel: tpu_custom_call.1
$region0: #{tpu_custom_call.1}
  #allocation0 [shape = 'u32[]', space=smem, size = 0x4, offset = 0x4, fixed_abs, tag = 'smem constant byte address 0x4 - core index']
  #allocation1 [shape = 'u32[144,128]{1,0:T(1,128)}', space=vmem, size = 0x12000, scoped, tag = 'internal scratch']
  %s0 = inlined_call_operand.hbm [shape: f32[8,128], index: 0, kind: input, shape index: {}]
  %s1 = inlined_call_operand.hbm [shape: f32[128,128], index: 1, kind: input, shape index: {}]
  %s2 = inlined_call_operand.vmem [shape: f32[1,128], index: 2, kind: input, shape index: {}]
  %s3 = inlined_call_operand.hbm [shape: f32[8,128], index: 3, kind: output, shape index: {}]
  %s4 = sld [smem:[#allocation0]]
  $region30: #{tpu_custom_call.1} parent=0
    _
  %s6 = ssub.s32 1, %s4
  %s7 = scalar_select 0, %s6, %s4
  $region1: #{tpu_custom_call.1} parent=0
    #allocation2 [shape = 'u8[4096]{0}', space=vmem, size = 0x1000, scoped, tag = 'input window, operand 0, single buffered']
    #allocation3 [shape = 's32[1]{0}', space=sflag, size = 0x4, scoped, tag = 'scoped memory for tpu_custom_call.1']
    #allocation4 [shape = 's32[1]{0}', space=sflag, size = 0x4, scoped, tag = 'scoped memory for tpu_custom_call.1']
    #allocation5 [shape = 'u8[65536]{0}', space=vmem, size = 0x10000, scoped, tag = 'input window, operand 1, single buffered']
    #allocation6 [shape = 's32[1]{0}', space=sflag, size = 0x4, scoped, tag = 'scoped memory for tpu_custom_call.1']
    #allocation7 [shape = 'u8[4096]{0}', space=vmem, size = 0x1000, scoped, tag = 'output window, operand 0, single buffered']
    %8 = vsyncpa [#allocation3], 0
    %9 = vsyncpa [#allocation6], 0
    %10 = vsyncpa [#allocation4], 0
    // Predicated region
    $region2: #{tpu_custom_call.1} parent=1 // pred_check
      _
    $region3: #{tpu_custom_call.1} parent=1 // pred_check_branch
      %12 = sbr.rel (0) target = $region5
    $region4: #{tpu_custom_call.1} parent=1 // pred_region
      %s14 = ssub.s32 128, 128
      %15 = vsyncadd [#allocation3], %s14
      %s17 = sshll.u32 [#allocation2], 4
      %s18 = int_to_ptr.vmem [resolvable:$true] %s17
      %20 = dma.hbm_to_vmem [thread:$0]  %s0, 128, %s18, [#allocation3]
    $region5: #{tpu_custom_call.1} parent=1 // pred_fallthru
      _
    // Predicated region
    $region6: #{tpu_custom_call.1} parent=1 // pred_check
      _
    $region7: #{tpu_custom_call.1} parent=1 // pred_check_branch
      %22 = sbr.rel (0) target = $region9
    $region8: #{tpu_custom_call.1} parent=1 // pred_region
      %s24 = ssub.s32 2048, 2048
      %25 = vsyncadd [#allocation6], %s24
      %s26 = sshll.u32 [#allocation5], 4
      %s27 = int_to_ptr.vmem [resolvable:$true] %s26
      %32 = dma.hbm_to_vmem [thread:$0]  %s1, 2048, %s27, [#allocation6], 128, 128, 8
    $region9: #{tpu_custom_call.1} parent=1 // pred_fallthru
      _
    // Predicated region
    $region10: #{tpu_custom_call.1} parent=1 // pred_check
      _
    $region11: #{tpu_custom_call.1} parent=1 // pred_check_branch
      %34 = sbr.rel (0) target = $region13
    $region12: #{tpu_custom_call.1} parent=1 // pred_region
      _
    $region13: #{tpu_custom_call.1} parent=1 // pred_fallthru
      _
    // Predicated region
    $region14: #{tpu_custom_call.1} parent=1 // pred_check
      _
    $region15: #{tpu_custom_call.1} parent=1 // pred_check_branch
      %36 = sbr.rel (0) target = $region17
    $region16: #{tpu_custom_call.1} parent=1 // pred_region
      %37 = dma.done [#allocation3], 128
    $region17: #{tpu_custom_call.1} parent=1 // pred_fallthru
      _
    // Predicated region
    $region18: #{tpu_custom_call.1} parent=1 // pred_check
      _
    $region19: #{tpu_custom_call.1} parent=1 // pred_check_branch
      %39 = sbr.rel (0) target = $region21
    $region20: #{tpu_custom_call.1} parent=1 // pred_region
      %40 = dma.done [#allocation6], 2048
    $region21: #{tpu_custom_call.1} parent=1 // pred_fallthru
      _
    %v41 = vld [vmem:[#allocation2] sm:$0xff]
    %v42 = vld [vmem:[#allocation5] sm:$0xff]
    %v43 = vld [vmem:[#allocation5 + $0x8] sm:$0xff]
    %v44 = vld [vmem:[#allocation5 + $0x10] sm:$0xff]
    %v45 = vld [vmem:[#allocation5 + $0x18] sm:$0xff]
    %v46 = vld [vmem:[#allocation5 + $0x20] sm:$0xff]
    %v47 = vld [vmem:[#allocation5 + $0x28] sm:$0xff]
    %v48 = vld [vmem:[#allocation5 + $0x30] sm:$0xff]
    %v49 = vld [vmem:[#allocation5 + $0x38] sm:$0xff]
    %v50 = vld [vmem:[#allocation5 + $0x40] sm:$0xff]
    %v51 = vld [vmem:[#allocation5 + $0x48] sm:$0xff]
    %v52 = vld [vmem:[#allocation5 + $0x50] sm:$0xff]
    %v53 = vld [vmem:[#allocation5 + $0x58] sm:$0xff]
    %v54 = vld [vmem:[#allocation5 + $0x60] sm:$0xff]
    %v55 = vld [vmem:[#allocation5 + $0x68] sm:$0xff]
    %v56 = vld [vmem:[#allocation5 + $0x70] sm:$0xff]
    %v57 = vld [vmem:[#allocation5 + $0x78] sm:$0xff]
    %v58 = vld [vmem:[%s2] sm:$0x1]
    %v60 = vlaneseq
    %v61 = vshrl.u32 %v60, 7
    %v62 = vsub.s32 0, %v61
    %v63 = vrot.slane %v58, %v62
    %65 = vmatprep.subr.mxu0 0.0
    %66 = vmatpush1.msra.mxu0 %v42
    %67 = vmatprep.subr.mxu0 0.0
    %68 = vmatpush1.msra.mxu0 %v43
    %69 = vmatprep.subr.mxu0 0.0
    %70 = vmatpush1.msra.mxu0 %v44
    %71 = vmatprep.subr.mxu0 0.0
    %72 = vmatpush1.msra.mxu0 %v45
    %73 = vmatprep.subr.mxu0 0.0
    %74 = vmatpush1.msra.mxu0 %v46
    %75 = vmatprep.subr.mxu0 0.0
    %76 = vmatpush1.msra.mxu0 %v47
    %77 = vmatprep.subr.mxu0 0.0
    %78 = vmatpush1.msra.mxu0 %v48
    %79 = vmatprep.subr.mxu0 0.0
    %80 = vmatpush1.msra.mxu0 %v49
    %81 = vmatprep.subr.mxu0 0.0
    %82 = vmatpush1.msra.mxu0 %v50
    %83 = vmatprep.subr.mxu0 0.0
    %84 = vmatpush1.msra.mxu0 %v51
    %85 = vmatprep.subr.mxu0 0.0
    %86 = vmatpush1.msra.mxu0 %v52
    %87 = vmatprep.subr.mxu0 0.0
    %88 = vmatpush1.msra.mxu0 %v53
    %89 = vmatprep.subr.mxu0 0.0
    %90 = vmatpush1.msra.mxu0 %v54
    %91 = vmatprep.subr.mxu0 0.0
    %92 = vmatpush1.msra.mxu0 %v55
    %93 = vmatprep.subr.mxu0 0.0
    %94 = vmatpush1.msra.mxu0 %v56
    %95 = vmatprep.subr.mxu0 0.0
    %96 = vmatpush1.msra.mxu0 %v57
    %97 = vmatprep.subr.mxu0 0.0
    %98 = vmatpush1.msra.mxu0 0.0
    %99 = vmatprep.subr.mxu0 0.0
    %100 = vmatpush1.msra.mxu0 0.0
    %101 = vmatprep.subr.mxu0 0.0
    %102 = vmatpush1.msra.mxu0 0.0
    %103 = vmatprep.subr.mxu0 0.0
    %104 = vmatpush1.msra.mxu0 0.0
    %105 = vmatprep.subr.mxu0 0.0
    %106 = vmatpush1.msra.mxu0 0.0
    %107 = vmatprep.subr.mxu0 0.0
    %108 = vmatpush1.msra.mxu0 0.0
    %109 = vmatprep.subr.mxu0 0.0
    %110 = vmatpush1.msra.mxu0 0.0
    %111 = vmatprep.subr.mxu0 0.0
    %112 = vmatpush1.msra.mxu0 0.0
    %113 = vmatprep.subr.mxu0 0.0
    %114 = vmatpush1.msra.mxu0 0.0
    %115 = vmatprep.subr.mxu0 0.0
    %116 = vmatpush1.msra.mxu0 0.0
    %117 = vmatprep.subr.mxu0 0.0
    %118 = vmatpush1.msra.mxu0 0.0
    %119 = vmatprep.subr.mxu0 0.0
    %120 = vmatpush1.msra.mxu0 0.0
    %121 = vmatprep.subr.mxu0 0.0
    %122 = vmatpush1.msra.mxu0 0.0
    %123 = vmatprep.subr.mxu0 0.0
    %124 = vmatpush1.msra.mxu0 0.0
    %125 = vmatprep.subr.mxu0 0.0
    %126 = vmatpush1.msra.mxu0 0.0
    %127 = vmatprep.subr.mxu0 0.0
    %128 = vmatpush1.msra.mxu0 0.0
    %129 = vmatprep.mubr.f32.mxu0 0.0
    %130 = vmatmul.mubr.f32.gmra.mrb[0].mxu0 %v41
    %v131 = vpop.f32.mrb[0].mxu0
    %v132 = vadd.f32 %v63, %v131
    %v133 = vpop.f32.mrb[0].mxu0
    %134 = vdwg.mxu0
    %135 = vst [vmem:[#allocation7] sm:$0xff] %v132
    // Predicated region
    $region22: #{tpu_custom_call.1} parent=1 // pred_check
      _
    $region23: #{tpu_custom_call.1} parent=1 // pred_check_branch
      %137 = sbr.rel (0) target = $region25
    $region24: #{tpu_custom_call.1} parent=1 // pred_region
      %s139 = ssub.s32 128, 128
      %140 = vsyncadd [#allocation4], %s139
      %s142 = sshll.u32 [#allocation7], 4
      %s143 = int_to_ptr.vmem [resolvable:$true] %s142
      %145 = dma.vmem_to_hbm [thread:$0]  %s143, 128, %s3, [#allocation4]
    $region25: #{tpu_custom_call.1} parent=1 // pred_fallthru
      _
    // Predicated region
    $region26: #{tpu_custom_call.1} parent=1 // pred_check
      _
    $region27: #{tpu_custom_call.1} parent=1 // pred_check_branch
      %147 = sbr.rel (0) target = $region29
    $region28: #{tpu_custom_call.1} parent=1 // pred_region
      %148 = dma.done [#allocation4], 128
    $region29: #{tpu_custom_call.1} parent=1 // pred_fallthru
      _
    %149 = vsyncpa [#allocation3], 1
    %150 = vsyncpa [#allocation6], 1
    %151 = vsyncpa [#allocation4], 1

</llo_original>
